<compile_context>
chip_gen: v7x
topology: tpu7x:2x2x1
jax: 0.10.0
libtpu: 0.0.40
codegen_flags: <defaults>
</compile_context>

<pallas_src>
import jax
import jax.numpy as jnp
from jax.experimental import pallas as pl
from jax.experimental.pallas import tpu as pltpu

# ---- module constants (PyTorch globals) -------------------------------------
SYN_SIZE = 4          # L
HIDDEN_SIZE = 32      # H (input_size == hidden_size == HIDDEN_SIZE)
BIAS = True
BASELINE = True       # forward uses basic_gcn_h
SEQ_LEN = 8           # n
BATCH = 2             # bat


def gcn_kernel(g_ref, x_ref, wb_ref, o_ref):
    """One batch element per grid step.

    g_ref : (L*n, n)     graph rows (l,i)-major, lanes = neighbour index j
    x_ref : (n, H)       node features
    wb_ref: (L, H+1, H)  per-label [W[l]; b[l]]  (bias folded in as row H)
    o_ref : (n, H)       relu((W*graph*x + bias) / norm)
    """
    Ln, n = g_ref.shape
    L, _, H = wb_ref.shape

    a = g_ref[...]                                               # (L*n, n) f32
    xe = jnp.concatenate(
        [x_ref[...], jnp.ones((n, 1), jnp.float32)], axis=-1)    # (n, H+1)

    # One MXU dot: rows l*n..(l+1)*n-1 hold the label-l messages; column H
    # holds the per-(l,i) neighbour row-sum (thanks to the ones column).
    s = jnp.dot(a, xe, preferred_element_type=jnp.float32)       # (L*n, H+1)

    # Projection + bias in 4 accumulated MXU dots on 8-row-aligned sublane
    # slices; the rowsum column rides along and hits b[l] (row H of wb_ref[l]).
    h = jnp.zeros((n, H), jnp.float32)
    norm = jnp.zeros((n, 1), jnp.float32)
    for l in range(L):                                           # L=4, static unroll
        s_l = s[l * n:(l + 1) * n, :]                            # (n, H+1)
        h = h + jnp.dot(s_l, wb_ref[l], preferred_element_type=jnp.float32)
        norm = norm + s_l[:, H:H + 1]                            # per-label rowsum

    # exact division (approx reciprocal could break the 1e-5 tolerance)
    o_ref[...] = jnp.maximum(h / (norm + 1e-10), 0.0).astype(o_ref.dtype)


@jax.jit
def gcn_forward(graph, nodes, W, b):
    """graph (B,n,n,L) f32, nodes (B,n,H) f32 -> (B,n,H) f32."""
    B, n, _, L = graph.shape
    H = nodes.shape[-1]

    # (B,n,n,L) -> (B, L*n, n): MXU-ready, lane-compact presentation of the
    # graph (contraction dim j on the lanes).  Fuses with producers under jit.
    g_lij = jnp.transpose(graph, (0, 3, 1, 2)).reshape(B, L * n, n)
    g_lij = g_lij.astype(jnp.float32)

    # Fold bias into the projection weights: wb[l] = [W[l]; b[l]] -> (L, H+1, H)
    wb = jnp.concatenate([W, b[:, None, :]], axis=1).astype(jnp.float32)

    # Batch as a pipelined grid axis (amortizes launch/DMA as B grows); shard
    # across both v7x TensorCores only when the batch is big enough to pay.
    dim_sem = ("parallel",) if B >= 8 else ("arbitrary",)

    return pl.pallas_call(
        gcn_kernel,
        out_shape=jax.ShapeDtypeStruct((B, n, H), jnp.float32),
        grid=(B,),
        in_specs=[
            pl.BlockSpec((None, L * n, n), lambda bb: (bb, 0, 0)),   # graph
            pl.BlockSpec((None, n, H), lambda bb: (bb, 0, 0)),       # nodes
            pl.BlockSpec((L, H + 1, H), lambda bb: (0, 0, 0)),       # [W; b]
        ],
        out_specs=pl.BlockSpec((None, n, H), lambda bb: (bb, 0, 0)),
        compiler_params=pltpu.CompilerParams(dimension_semantics=dim_sem),
    )(g_lij, nodes.astype(jnp.float32), wb)


def ref_forward(graph, nodes, W, b):
    """Pure-JAX transcription of the PyTorch basic_gcn_h + forward."""
    B, n, _, L = graph.shape
    H = nodes.shape[-1]
    gT = jnp.transpose(graph, (0, 1, 3, 2)).reshape(B, n * L, n)
    x = jnp.einsum('bpj,bjk->bpk', gT, nodes).reshape(B, n, L * H)
    h = x @ W.reshape(L * H, H)
    if BIAS:
        bias = (graph.reshape(B * n * n, L) @ b).reshape(B, n, n, H).sum(2)
        h = h + bias
    norm = graph.reshape(B, n, n * L).sum(-1)[..., None] + 1e-10
    return jnp.maximum(h / norm, 0.0)


def xavier_normal(key, shape):
    # PyTorch xavier_normal_: fan_in = dim1 * prod(dims[2:]), fan_out = dim0 * prod(dims[2:])
    recept = 1
    for d in shape[2:]:
        recept *= d
    fan_in = shape[1] * recept
    fan_out = shape[0] * recept
    std = (2.0 / (fan_in + fan_out)) ** 0.5
    return std * jax.random.normal(key, shape, dtype=jnp.float32)


if __name__ == "__main__":
    key = jax.random.PRNGKey(0)
    k_g, k_x, k_w, k_b = jax.random.split(key, 4)

    B, n, L, H = BATCH, SEQ_LEN, SYN_SIZE, HIDDEN_SIZE

    # adjacency-like graph tensor (non-negative so norm > 0), node features
    graph = jax.random.bernoulli(k_g, 0.3, (B, n, n, L)).astype(jnp.float32)
    nodes = jax.random.normal(k_x, (B, n, H), dtype=jnp.float32)

    # parameters (xavier-normal, deterministic). label_rank/Q/P/b of the
    # rank-optimized path are unused under BASELINE=True and therefore skipped.
    W = xavier_normal(k_w, (L, H, H))   # (SYN_SIZE, input_size, hidden_size)
    b = xavier_normal(k_b, (L, H))      # (SYN_SIZE, hidden_size)

    out = jax.block_until_ready(gcn_forward(graph, nodes, W, b))
    ref = jax.block_until_ready(ref_forward(graph, nodes, W, b))

    assert out.shape == (B, n, H)
    assert jnp.allclose(out, ref, rtol=1e-5, atol=1e-5), "mismatch vs JAX reference"
    print("KERNEL_OK")
</pallas_src>

<mosaic_0001>
module attributes {stable_mosaic.version = 11 : i64} {
  func.func @gcn_kernel(%arg0: i32, %arg1: memref<1x32x8xf32, #tpu.memory_space<vmem>>, %arg2: memref<1x8x32xf32, #tpu.memory_space<vmem>>, %arg3: memref<4x33x32xf32, #tpu.memory_space<vmem>>, %arg4: memref<1x8x32xf32, #tpu.memory_space<vmem>>) attributes {dimension_semantics = [#tpu.dimension_semantics<arbitrary>], iteration_bounds = array<i64: 2>, scalar_prefetch = 0 : i64, scratch_operands = 0 : i64, tpu.core_type = #tpu.core_type<tc>, window_params = [{transform_indices = @transform_0, window_bounds = array<i64: 1, 32, 8>}, {transform_indices = @transform_1, window_bounds = array<i64: 1, 8, 32>}, {pipeline_mode = #tpu.pipeline_mode<synchronous>, transform_indices = @transform_2, window_bounds = array<i64: 4, 33, 32>}, {transform_indices = @transform_3, window_bounds = array<i64: 1, 8, 32>}]} {
    %c0 = arith.constant 0 : index
    %c0_0 = arith.constant 0 : index
    %c0_1 = arith.constant 0 : index
    %0 = vector.load %arg1[%c0, %c0_0, %c0_1] : memref<1x32x8xf32, #tpu.memory_space<vmem>>, vector<1x32x8xf32>
    %1 = vector.shape_cast %0 : vector<1x32x8xf32> to vector<32x8xf32>
    %c0_2 = arith.constant 0 : index
    %c0_3 = arith.constant 0 : index
    %c0_4 = arith.constant 0 : index
    %2 = vector.load %arg2[%c0_2, %c0_3, %c0_4] : memref<1x8x32xf32, #tpu.memory_space<vmem>>, vector<1x8x32xf32>
    %3 = vector.shape_cast %2 : vector<1x8x32xf32> to vector<8x32xf32>
    %cst = arith.constant 1.000000e+00 : f32
    %4 = vector.broadcast %cst : f32 to vector<8x1xf32>
    %5 = tpu.concatenate %3, %4 in 1 : vector<8x32xf32>, vector<8x1xf32> -> vector<8x33xf32>
    %cst_5 = arith.constant dense<0.000000e+00> : vector<32x33xf32>
    %6 = tpu.matmul %1, %5, %cst_5 {dimension_numbers = #tpu.dot_dimension_numbers<[1], [0], [0], [1], [0, 0, 1, 1], [], []>} : vector<32x8xf32>, vector<8x33xf32>, vector<32x33xf32> -> vector<32x33xf32>
    %cst_6 = arith.constant 0.000000e+00 : f32
    %7 = vector.broadcast %cst_6 : f32 to vector<8x32xf32>
    %cst_7 = arith.constant 0.000000e+00 : f32
    %8 = vector.broadcast %cst_7 : f32 to vector<8x1xf32>
    %9 = vector.extract_strided_slice %6 {offsets = [0, 0], sizes = [8, 33], strides = [1, 1]} : vector<32x33xf32> to vector<8x33xf32>
    %c0_8 = arith.constant 0 : index
    %c0_9 = arith.constant 0 : index
    %c0_10 = arith.constant 0 : index
    %10 = vector.load %arg3[%c0_8, %c0_9, %c0_10] : memref<4x33x32xf32, #tpu.memory_space<vmem>>, vector<1x33x32xf32>
    %11 = vector.shape_cast %10 : vector<1x33x32xf32> to vector<33x32xf32>
    %cst_11 = arith.constant dense<0.000000e+00> : vector<8x32xf32>
    %12 = tpu.matmul %9, %11, %cst_11 {dimension_numbers = #tpu.dot_dimension_numbers<[1], [0], [0], [1], [0, 0, 1, 1], [], []>} : vector<8x33xf32>, vector<33x32xf32>, vector<8x32xf32> -> vector<8x32xf32>
    %13 = arith.addf %7, %12 : vector<8x32xf32>
    %14 = vector.extract_strided_slice %9 {offsets = [0, 32], sizes = [8, 1], strides = [1, 1]} : vector<8x33xf32> to vector<8x1xf32>
    %15 = arith.addf %8, %14 : vector<8x1xf32>
    %16 = vector.extract_strided_slice %6 {offsets = [8, 0], sizes = [8, 33], strides = [1, 1]} : vector<32x33xf32> to vector<8x33xf32>
    %c1 = arith.constant 1 : index
    %c0_12 = arith.constant 0 : index
    %c0_13 = arith.constant 0 : index
    %17 = vector.load %arg3[%c1, %c0_12, %c0_13] : memref<4x33x32xf32, #tpu.memory_space<vmem>>, vector<1x33x32xf32>
    %18 = vector.shape_cast %17 : vector<1x33x32xf32> to vector<33x32xf32>
    %cst_14 = arith.constant dense<0.000000e+00> : vector<8x32xf32>
    %19 = tpu.matmul %16, %18, %cst_14 {dimension_numbers = #tpu.dot_dimension_numbers<[1], [0], [0], [1], [0, 0, 1, 1], [], []>} : vector<8x33xf32>, vector<33x32xf32>, vector<8x32xf32> -> vector<8x32xf32>
    %20 = arith.addf %13, %19 : vector<8x32xf32>
    %21 = vector.extract_strided_slice %16 {offsets = [0, 32], sizes = [8, 1], strides = [1, 1]} : vector<8x33xf32> to vector<8x1xf32>
    %22 = arith.addf %15, %21 : vector<8x1xf32>
    %23 = vector.extract_strided_slice %6 {offsets = [16, 0], sizes = [8, 33], strides = [1, 1]} : vector<32x33xf32> to vector<8x33xf32>
    %c2 = arith.constant 2 : index
    %c0_15 = arith.constant 0 : index
    %c0_16 = arith.constant 0 : index
    %24 = vector.load %arg3[%c2, %c0_15, %c0_16] : memref<4x33x32xf32, #tpu.memory_space<vmem>>, vector<1x33x32xf32>
    %25 = vector.shape_cast %24 : vector<1x33x32xf32> to vector<33x32xf32>
    %cst_17 = arith.constant dense<0.000000e+00> : vector<8x32xf32>
    %26 = tpu.matmul %23, %25, %cst_17 {dimension_numbers = #tpu.dot_dimension_numbers<[1], [0], [0], [1], [0, 0, 1, 1], [], []>} : vector<8x33xf32>, vector<33x32xf32>, vector<8x32xf32> -> vector<8x32xf32>
    %27 = arith.addf %20, %26 : vector<8x32xf32>
    %28 = vector.extract_strided_slice %23 {offsets = [0, 32], sizes = [8, 1], strides = [1, 1]} : vector<8x33xf32> to vector<8x1xf32>
    %29 = arith.addf %22, %28 : vector<8x1xf32>
    %30 = vector.extract_strided_slice %6 {offsets = [24, 0], sizes = [8, 33], strides = [1, 1]} : vector<32x33xf32> to vector<8x33xf32>
    %c3 = arith.constant 3 : index
    %c0_18 = arith.constant 0 : index
    %c0_19 = arith.constant 0 : index
    %31 = vector.load %arg3[%c3, %c0_18, %c0_19] : memref<4x33x32xf32, #tpu.memory_space<vmem>>, vector<1x33x32xf32>
    %32 = vector.shape_cast %31 : vector<1x33x32xf32> to vector<33x32xf32>
    %cst_20 = arith.constant dense<0.000000e+00> : vector<8x32xf32>
    %33 = tpu.matmul %30, %32, %cst_20 {dimension_numbers = #tpu.dot_dimension_numbers<[1], [0], [0], [1], [0, 0, 1, 1], [], []>} : vector<8x33xf32>, vector<33x32xf32>, vector<8x32xf32> -> vector<8x32xf32>
    %34 = arith.addf %27, %33 : vector<8x32xf32>
    %35 = vector.extract_strided_slice %30 {offsets = [0, 32], sizes = [8, 1], strides = [1, 1]} : vector<8x33xf32> to vector<8x1xf32>
    %36 = arith.addf %29, %35 : vector<8x1xf32>
    %cst_21 = arith.constant 1.000000e-10 : f32
    %37 = vector.broadcast %cst_21 : f32 to vector<8x1xf32>
    %38 = arith.addf %36, %37 : vector<8x1xf32>
    %39 = vector.broadcast %38 : vector<8x1xf32> to vector<8x32xf32>
    %40 = arith.divf %34, %39 : vector<8x32xf32>
    %cst_22 = arith.constant 0.000000e+00 : f32
    %41 = vector.broadcast %cst_22 : f32 to vector<8x32xf32>
    %42 = arith.maximumf %40, %41 : vector<8x32xf32>
    %c0_23 = arith.constant 0 : index
    %c0_24 = arith.constant 0 : index
    %c0_25 = arith.constant 0 : index
    %43 = vector.load %arg4[%c0_23, %c0_24, %c0_25] : memref<1x8x32xf32, #tpu.memory_space<vmem>>, vector<1x8x32xf32>
    %44 = vector.shape_cast %43 : vector<1x8x32xf32> to vector<8x32xf32>
    %45 = vector.shape_cast %42 : vector<8x32xf32> to vector<1x8x32xf32>
    tpu.vector_store %arg4[%c0_23, %c0_24, %c0_25], %45 {strides = array<i32>} : memref<1x8x32xf32, #tpu.memory_space<vmem>>, vector<1x8x32xf32>,
    return
  }
  func.func @transform_0(%arg0: i32) -> (i32, i32, i32) {
    %c0_i32 = arith.constant 0 : i32
    %c0_i32_0 = arith.constant 0 : i32
    %c0_i32_1 = arith.constant 0 : i32
    return %arg0, %c0_i32, %c0_i32_0 : i32, i32, i32
  }
  func.func @transform_1(%arg0: i32) -> (i32, i32, i32) {
    %c0_i32 = arith.constant 0 : i32
    %c0_i32_0 = arith.constant 0 : i32
    %c0_i32_1 = arith.constant 0 : i32
    return %arg0, %c0_i32, %c0_i32_0 : i32, i32, i32
  }
  func.func @transform_2(%arg0: i32) -> (i32, i32, i32) {
    %c0_i32 = arith.constant 0 : i32
    %c0_i32_0 = arith.constant 0 : i32
    %c0_i32_1 = arith.constant 0 : i32
    %c0_i32_2 = arith.constant 0 : i32
    return %c0_i32, %c0_i32_0, %c0_i32_1 : i32, i32, i32
  }
  func.func @transform_3(%arg0: i32) -> (i32, i32, i32) {
    %c0_i32 = arith.constant 0 : i32
    %c0_i32_0 = arith.constant 0 : i32
    %c0_i32_1 = arith.constant 0 : i32
    return %arg0, %c0_i32, %c0_i32_0 : i32, i32, i32
  }
}

</mosaic_0001>

<llo_original>
// kernel: gcn_forward.1
$region0: #{gcn_forward.1}
  #allocation0 [shape = 'u32[]', space=smem, size = 0x4, offset = 0x4, fixed_abs, tag = 'smem constant byte address 0x4 - core index']
  #allocation1 [shape = 'u32[144,128]{1,0:T(1,128)}', space=vmem, size = 0x12000, scoped, tag = 'internal scratch']
  %s0 = inlined_call_operand.vmem [shape: f32[2,32,8], index: 0, kind: input, shape index: {}]
  %s1 = inlined_call_operand.vmem [shape: f32[2,8,32], index: 1, kind: input, shape index: {}]
  %s2 = inlined_call_operand.vmem [shape: f32[4,33,32], index: 2, kind: input, shape index: {}]
  %s3 = inlined_call_operand.hbm [shape: f32[2,8,32], index: 3, kind: output, shape index: {}]
  %s4 = sld [smem:[#allocation0]]
  $region45: #{gcn_forward.1} parent=0
    _
  %s6 = ssub.s32 1, %s4
  %s7 = scalar_select 0, %s6, %s4
  $region1: #{gcn_forward.1} parent=0
    #allocation2 [shape = 'u8[8192]{0}', space=vmem, size = 0x2000, scoped, tag = 'output window, operand 0']
    #allocation3 [shape = 's32[2]{0}', space=sflag, size = 0x8, scoped, tag = 'scoped memory for gcn_forward.1']
    %8 = vsyncpa [#allocation3], 0
    %s9 = scalar_lea.sflag [#allocation3], 1
    %10 = vsyncpa %s9, 0
    loop: start=0, step=1, limit=4
    $region2: #{gcn_forward.1} parent=1 // loop_pre_header
      _
    $region3: #{gcn_forward.1} parent=1 // loop_header
      %s12 = sphi 0, %s16
      %p13 = scmp.ge.s32.totalorder %s12, 4
      %s22 = sphi 0, %s24
      %s25 = sphi 0, %s22
      %s26 = sphi 0, %s25
      %s42 = sphi 0, %s26
      %s48 = sphi 0, %s50
      %s51 = sphi 0, %s48
      %s52 = sphi 0, %s51
      %s68 = sphi 0, %s52
      %s72 = sphi 0, %s72
      %s74 = sphi 0, %s72
      %s75 = sphi 0, %s74
      %s89 = sphi 0, %s75
      %s95 = sphi 0, %s97
      %s98 = sphi 0, %s95
      %s99 = sphi 0, %s98
      %s115 = sphi 0, %s99
    $region4: #{gcn_forward.1} parent=1 // loop_header_branch
      %15 = sbr.rel (%p13) target = $region8
    $region5: #{gcn_forward.1} parent=1 // loop_body
      %s17 = ssub.s32 %s12, 1
      %s18 = ssub.s32 %s12, 2
      %s19 = sadd.s32 %s12, 1
      %s20 = ssub.s32 %s12, %s19
      %p21 = scmp.eq.s32.totalorder %s20, 0
      %s23 = sadd.s32 %s22, 1
      %s24 = scalar_select %p21, %s22, %s23
      %p27 = pneg %p21
      %p28 = scmp.eq.s32.totalorder %s12, 1
      %p29 = por %p27, %p28
      %p30 = scmp.ne.s32.totalorder %s22, %s25
      %p31 = scmp.eq.s32.totalorder %s12, 0
      %p32 = por %p30, %p31
      %p33 = scmp.ne.s32.totalorder %s22, %s25
      %p34 = scmp.eq.s32.totalorder %s17, 1
      %p35 = por %p33, %p34
      %p36 = scmp.ne.s32.totalorder %s25, %s26
      %p37 = scmp.eq.s32.totalorder %s17, 0
      %p38 = por %p36, %p37
      %p39 = scmp.ne.s32.totalorder %s25, %s26
      %p40 = scmp.eq.s32.totalorder %s18, 1
      %p41 = por %p39, %p40
      %p43 = scmp.ne.s32.totalorder %s26, %s42
      %p44 = scmp.eq.s32.totalorder %s18, 0
      %p45 = por %p43, %p44
      %s46 = ssub.s32 %s12, %s19
      %p47 = scmp.eq.s32.totalorder %s46, 0
      %s49 = sadd.s32 %s48, 1
      %s50 = scalar_select %p47, %s48, %s49
      %p53 = pneg %p47
      %p54 = scmp.eq.s32.totalorder %s12, 1
      %p55 = por %p53, %p54
      %p56 = scmp.ne.s32.totalorder %s48, %s51
      %p57 = scmp.eq.s32.totalorder %s12, 0
      %p58 = por %p56, %p57
      %p59 = scmp.ne.s32.totalorder %s48, %s51
      %p60 = scmp.eq.s32.totalorder %s17, 1
      %p61 = por %p59, %p60
      %p62 = scmp.ne.s32.totalorder %s51, %s52
      %p63 = scmp.eq.s32.totalorder %s17, 0
      %p64 = por %p62, %p63
      %p65 = scmp.ne.s32.totalorder %s51, %s52
      %p66 = scmp.eq.s32.totalorder %s18, 1
      %p67 = por %p65, %p66
      %p69 = scmp.ne.s32.totalorder %s52, %s68
      %p70 = scmp.eq.s32.totalorder %s18, 0
      %p71 = por %p69, %p70
      %s73 = sadd.s32 %s72, 1
      %p76 = scmp.eq.s32.totalorder %s12, 1
      %p77 = scmp.ne.s32.totalorder %s72, %s74
      %p78 = scmp.eq.s32.totalorder %s12, 0
      %p79 = por %p77, %p78
      %p80 = scmp.ne.s32.totalorder %s72, %s74
      %p81 = scmp.eq.s32.totalorder %s17, 1
      %p82 = por %p80, %p81
      %p83 = scmp.ne.s32.totalorder %s74, %s75
      %p84 = scmp.eq.s32.totalorder %s17, 0
      %p85 = por %p83, %p84
      %p86 = scmp.ne.s32.totalorder %s74, %s75
      %p87 = scmp.eq.s32.totalorder %s18, 1
      %p88 = por %p86, %p87
      %p90 = scmp.ne.s32.totalorder %s75, %s89
      %p91 = scmp.eq.s32.totalorder %s18, 0
      %p92 = por %p90, %p91
      %s93 = ssub.s32 %s12, %s19
      %p94 = scmp.eq.s32.totalorder %s93, 0
      %s96 = sadd.s32 %s95, 1
      %s97 = scalar_select %p94, %s95, %s96
      %p100 = pneg %p94
      %p101 = scmp.eq.s32.totalorder %s12, 1
      %p102 = por %p100, %p101
      %p103 = scmp.ne.s32.totalorder %s95, %s98
      %p104 = scmp.eq.s32.totalorder %s12, 0
      %p105 = por %p103, %p104
      %p106 = scmp.ne.s32.totalorder %s95, %s98
      %p107 = scmp.eq.s32.totalorder %s17, 1
      %p108 = por %p106, %p107
      %p109 = scmp.ne.s32.totalorder %s98, %s99
      %p110 = scmp.eq.s32.totalorder %s17, 0
      %p111 = por %p109, %p110
      %p112 = scmp.ne.s32.totalorder %s98, %s99
      %p113 = scmp.eq.s32.totalorder %s18, 1
      %p114 = por %p112, %p113
      %p116 = scmp.ne.s32.totalorder %s99, %s115
      %p117 = scmp.eq.s32.totalorder %s18, 0
      %p118 = por %p116, %p117
      %p119 = scmp.le.s32.totalorder 1, %s12
      %p120 = scmp.lt.s32.totalorder %s12, 3
      %p121 = pnand %p119, %p120
      %p122 = pneg %p121
      // Predicated region
      $region9: #{gcn_forward.1} parent=5 // pred_check
        _
      $region10: #{gcn_forward.1} parent=5 // pred_check_branch
        %124 = sbr.rel (%p121) target = $region12
      $region11: #{gcn_forward.1} parent=5 // pred_region
        %s125 = ssub.s32 %s12, 1
        // Predicated region
        $region13: #{gcn_forward.1} parent=11 // pred_check
          %p126 = pneg %p85
        $region14: #{gcn_forward.1} parent=11 // pred_check_branch
          %128 = sbr.rel (%p126) target = $region16
        $region15: #{gcn_forward.1} parent=11 // pred_region
          _
        $region16: #{gcn_forward.1} parent=11 // pred_fallthru
          _
      $region12: #{gcn_forward.1} parent=5 // pred_fallthru
        _
      %p129 = scmp.lt.s32.totalorder %s12, 2
      // Predicated region
      $region17: #{gcn_forward.1} parent=5 // pred_check
        %p130 = pneg %p129
      $region18: #{gcn_forward.1} parent=5 // pred_check_branch
        %132 = sbr.rel (%p130) target = $region20
      $region19: #{gcn_forward.1} parent=5 // pred_region
        // Predicated region
        $region21: #{gcn_forward.1} parent=19 // pred_check
          %p133 = pneg %p32
        $region22: #{gcn_forward.1} parent=19 // pred_check_branch
          %135 = sbr.rel (%p133) target = $region24
        $region23: #{gcn_forward.1} parent=19 // pred_region
          %p136 = scmp.lt.s32.totalorder %s12, 1
          %s137 = scalar_select %p136, %s12, 1
          %s138 = smul.addr %s137, 4
          %s139 = smul.addr %s138, 8
          %s140 = scalar_lea.vmem %s0, %s139
        $region24: #{gcn_forward.1} parent=19 // pred_fallthru
          _
        // Predicated region
        $region25: #{gcn_forward.1} parent=19 // pred_check
          %p141 = pneg %p58
        $region26: #{gcn_forward.1} parent=19 // pred_check_branch
          %143 = sbr.rel (%p141) target = $region28
        $region27: #{gcn_forward.1} parent=19 // pred_region
          %p144 = scmp.lt.s32.totalorder %s12, 1
          %s145 = scalar_select %p144, %s12, 1
          %s146 = smul.addr %s145, 8
          %s147 = scalar_lea.vmem %s1, %s146
        $region28: #{gcn_forward.1} parent=19 // pred_fallthru
          _
      $region20: #{gcn_forward.1} parent=5 // pred_fallthru
        _
      %p148 = scmp.le.s32.totalorder 1, %s12
      %p149 = scmp.lt.s32.totalorder %s12, 3
      %p150 = pnand %p148, %p149
      %p151 = pneg %p150
      // Predicated region
      $region29: #{gcn_forward.1} parent=5 // pred_check
        _
      $region30: #{gcn_forward.1} parent=5 // pred_check_branch
        %153 = sbr.rel (%p150) target = $region32
      $region31: #{gcn_forward.1} parent=5 // pred_region
        %s154 = ssub.s32 %s12, 1
        %p155 = scmp.lt.s32.totalorder %s17, 1
        %s156 = scalar_select %p155, %s17, 1
        %s157 = smul.addr %s156, 4
        %s158 = smul.addr %s157, 8
        %s159 = scalar_lea.vmem %s0, %s158
        %p160 = pneg %p38
        %p161 = pneg %p35
        %p162 = scmp.lt.s32.totalorder %s17, 1
        %s163 = scalar_select %p162, %s17, 1
        %s164 = smul.addr %s163, 8
        %s165 = scalar_lea.vmem %s1, %s164
        %p166 = pneg %p64
        %p167 = pneg %p61
        %p168 = pneg %p85
        %p169 = pneg %p82
        %p170 = pneg %p111
        %p171 = pneg %p108
        %s172 = sand.u32 %s98, 1
        %s173 = scalar_lea.sflag [#allocation3], %s172
        %s174 = sand.u32 %s98, 1
        %s175 = smul.addr %s174, 8
        %s176 = scalar_lea.vmem [#allocation2], %s175
        %p177 = scmp.lt.s32.totalorder %s17, 1
        %s178 = scalar_select %p177, %s17, 1
        %s179 = smul.addr %s178, 4
        %s180 = smul.addr %s179, 8
        %s181 = scalar_lea.vmem %s0, %s180
        %p182 = scmp.lt.s32.totalorder %s17, 1
        %s183 = scalar_select %p182, %s17, 1
        %s184 = smul.addr %s183, 8
        %s185 = scalar_lea.vmem %s1, %s184
        %v186 = vld [vmem:[%s181] sm:$0xff]
        %v187 = vld [vmem:[%s181 + $0x8] sm:$0xff]
        %v188 = vld [vmem:[%s181 + $0x10] sm:$0xff]
        %v189 = vld [vmem:[%s181 + $0x18] sm:$0xff]
        %v190 = vld [vmem:[%s185] sm:$0xff]
        %vm191 = vcmask 261120
        %v192 = vsel %vm191, %v190, 1.0
        %vm193 = vcmask 64512
        %v195 = vsel %vm193, %v186, 0
        %v198 = vsel %vm193, %v187, 0
        %v201 = vsel %vm193, %v188, 0
        %v204 = vsel %vm193, %v189, 0
        %206 = vmatprep.subr.mxu0 0.0
        %207 = vmatpush1.msra.mxu0 %v192
        %208 = vmatprep.subr.mxu0 0.0
        %209 = vmatpush1.msra.mxu0 0.0
        %210 = vmatprep.subr.mxu0 0.0
        %211 = vmatpush1.msra.mxu0 0.0
        %212 = vmatprep.subr.mxu0 0.0
        %213 = vmatpush1.msra.mxu0 0.0
        %214 = vmatprep.subr.mxu0 0.0
        %215 = vmatpush1.msra.mxu0 0.0
        %216 = vmatprep.subr.mxu0 0.0
        %217 = vmatpush1.msra.mxu0 0.0
        %218 = vmatprep.subr.mxu0 0.0
        %219 = vmatpush1.msra.mxu0 0.0
        %220 = vmatprep.subr.mxu0 0.0
        %221 = vmatpush1.msra.mxu0 0.0
        %222 = vmatprep.subr.mxu0 0.0
        %223 = vmatpush1.msra.mxu0 0.0
        %224 = vmatprep.subr.mxu0 0.0
        %225 = vmatpush1.msra.mxu0 0.0
        %226 = vmatprep.subr.mxu0 0.0
        %227 = vmatpush1.msra.mxu0 0.0
        %228 = vmatprep.subr.mxu0 0.0
        %229 = vmatpush1.msra.mxu0 0.0
        %230 = vmatprep.subr.mxu0 0.0
        %231 = vmatpush1.msra.mxu0 0.0
        %232 = vmatprep.subr.mxu0 0.0
        %233 = vmatpush1.msra.mxu0 0.0
        %234 = vmatprep.subr.mxu0 0.0
        %235 = vmatpush1.msra.mxu0 0.0
        %236 = vmatprep.subr.mxu0 0.0
        %237 = vmatpush1.msra.mxu0 0.0
        %238 = vmatprep.subr.mxu0 0.0
        %239 = vmatpush1.msra.mxu0 0.0
        %240 = vmatprep.subr.mxu0 0.0
        %241 = vmatpush1.msra.mxu0 0.0
        %242 = vmatprep.subr.mxu0 0.0
        %243 = vmatpush1.msra.mxu0 0.0
        %244 = vmatprep.subr.mxu0 0.0
        %245 = vmatpush1.msra.mxu0 0.0
        %246 = vmatprep.subr.mxu0 0.0
        %247 = vmatpush1.msra.mxu0 0.0
        %248 = vmatprep.subr.mxu0 0.0
        %249 = vmatpush1.msra.mxu0 0.0
        %250 = vmatprep.subr.mxu0 0.0
        %251 = vmatpush1.msra.mxu0 0.0
        %252 = vmatprep.subr.mxu0 0.0
        %253 = vmatpush1.msra.mxu0 0.0
        %254 = vmatprep.subr.mxu0 0.0
        %255 = vmatpush1.msra.mxu0 0.0
        %256 = vmatprep.subr.mxu0 0.0
        %257 = vmatpush1.msra.mxu0 0.0
        %258 = vmatprep.subr.mxu0 0.0
        %259 = vmatpush1.msra.mxu0 0.0
        %260 = vmatprep.subr.mxu0 0.0
        %261 = vmatpush1.msra.mxu0 0.0
        %262 = vmatprep.subr.mxu0 0.0
        %263 = vmatpush1.msra.mxu0 0.0
        %264 = vmatprep.subr.mxu0 0.0
        %265 = vmatpush1.msra.mxu0 0.0
        %266 = vmatprep.subr.mxu0 0.0
        %267 = vmatpush1.msra.mxu0 0.0
        %268 = vmatprep.subr.mxu0 0.0
        %269 = vmatpush1.msra.mxu0 0.0
        %270 = vmatprep.mubr.f32.mxu0 0.0
        %271 = vmatmul.mubr.f32.gmra.mrb[0].mxu0 %v195
        %v272 = vpop.f32.mrb[0].mxu0
        %v273 = vadd.f32 0.0, %v272
        %v274 = vpop.f32.mrb[0].mxu0
        %275 = vmatprep.mubr.f32.mxu0 0.0
        %276 = vmatmul.mubr.f32.gmra.mrb[0].mxu0 %v198
        %v277 = vpop.f32.mrb[0].mxu0
        %v278 = vadd.f32 0.0, %v277
        %v279 = vpop.f32.mrb[0].mxu0
        %280 = vmatprep.mubr.f32.mxu0 0.0
        %281 = vmatmul.mubr.f32.gmra.mrb[0].mxu0 %v201
        %v282 = vpop.f32.mrb[0].mxu0
        %v283 = vadd.f32 0.0, %v282
        %v284 = vpop.f32.mrb[0].mxu0
        %285 = vmatprep.mubr.f32.mxu0 0.0
        %286 = vmatmul.mubr.f32.gmra.mrb[0].mxu0 %v204
        %v287 = vpop.f32.mrb[0].mxu0
        %v288 = vadd.f32 0.0, %v287
        %v289 = vpop.f32.mrb[0].mxu0
        %290 = vdwg.mxu0
        %v291 = vld [vmem:[%s2] sm:$0xff]
        %v292 = vld [vmem:[%s2 + $0x8] sm:$0xff]
        %v293 = vld [vmem:[%s2 + $0x10] sm:$0xff]
        %v294 = vld [vmem:[%s2 + $0x18] sm:$0xff]
        %v295 = vld [vmem:[%s2 + $0x20] sm:$0x1]
        %v296 = vadd.f32 %v273, 0.0
        %s297 = scalar_lea.vmem %s2, 40
        %v298 = vld [vmem:[%s297] sm:$0xff]
        %v299 = vld [vmem:[%s297 + $0x8] sm:$0xff]
        %v300 = vld [vmem:[%s297 + $0x10] sm:$0xff]
        %v301 = vld [vmem:[%s297 + $0x18] sm:$0xff]
        %v302 = vld [vmem:[%s297 + $0x20] sm:$0x1]
        %vm303 = vcmask 269312
        %v305 = vsel %vm303, %v278, 0
        %vm307 = vcmask 1040384
        %v309 = vsel %vm307, %v302, 0
        %311 = vmatprep.subr.mxu0 0.0
        %312 = vmatpush1.msra.mxu0 %v298
        %313 = vmatprep.subr.mxu0 0.0
        %314 = vmatpush1.msra.mxu0 %v299
        %315 = vmatprep.subr.mxu0 0.0
        %316 = vmatpush1.msra.mxu0 %v300
        %317 = vmatprep.subr.mxu0 0.0
        %318 = vmatpush1.msra.mxu0 %v301
        %319 = vmatprep.subr.mxu0 0.0
        %320 = vmatpush1.msra.mxu0 %v309
        %321 = vmatprep.subr.mxu0 0.0
        %322 = vmatpush1.msra.mxu0 0.0
        %323 = vmatprep.subr.mxu0 0.0
        %324 = vmatpush1.msra.mxu0 0.0
        %325 = vmatprep.subr.mxu0 0.0
        %326 = vmatpush1.msra.mxu0 0.0
        %327 = vmatprep.subr.mxu0 0.0
        %328 = vmatpush1.msra.mxu0 0.0
        %329 = vmatprep.subr.mxu0 0.0
        %330 = vmatpush1.msra.mxu0 0.0
        %331 = vmatprep.subr.mxu0 0.0
        %332 = vmatpush1.msra.mxu0 0.0
        %333 = vmatprep.subr.mxu0 0.0
        %334 = vmatpush1.msra.mxu0 0.0
        %335 = vmatprep.subr.mxu0 0.0
        %336 = vmatpush1.msra.mxu0 0.0
        %337 = vmatprep.subr.mxu0 0.0
        %338 = vmatpush1.msra.mxu0 0.0
        %339 = vmatprep.subr.mxu0 0.0
        %340 = vmatpush1.msra.mxu0 0.0
        %341 = vmatprep.subr.mxu0 0.0
        %342 = vmatpush1.msra.mxu0 0.0
        %343 = vmatprep.subr.mxu0 0.0
        %344 = vmatpush1.msra.mxu0 0.0
        %345 = vmatprep.subr.mxu0 0.0
        %346 = vmatpush1.msra.mxu0 0.0
        %347 = vmatprep.subr.mxu0 0.0
        %348 = vmatpush1.msra.mxu0 0.0
        %349 = vmatprep.subr.mxu0 0.0
        %350 = vmatpush1.msra.mxu0 0.0
        %351 = vmatprep.subr.mxu0 0.0
        %352 = vmatpush1.msra.mxu0 0.0
        %353 = vmatprep.subr.mxu0 0.0
        %354 = vmatpush1.msra.mxu0 0.0
        %355 = vmatprep.subr.mxu0 0.0
        %356 = vmatpush1.msra.mxu0 0.0
        %357 = vmatprep.subr.mxu0 0.0
        %358 = vmatpush1.msra.mxu0 0.0
        %359 = vmatprep.subr.mxu0 0.0
        %360 = vmatpush1.msra.mxu0 0.0
        %361 = vmatprep.subr.mxu0 0.0
        %362 = vmatpush1.msra.mxu0 0.0
        %363 = vmatprep.subr.mxu0 0.0
        %364 = vmatpush1.msra.mxu0 0.0
        %365 = vmatprep.subr.mxu0 0.0
        %366 = vmatpush1.msra.mxu0 0.0
        %367 = vmatprep.subr.mxu0 0.0
        %368 = vmatpush1.msra.mxu0 0.0
        %369 = vmatprep.subr.mxu0 0.0
        %370 = vmatpush1.msra.mxu0 0.0
        %371 = vmatprep.subr.mxu0 0.0
        %372 = vmatpush1.msra.mxu0 0.0
        %373 = vmatprep.subr.mxu0 0.0
        %374 = vmatpush1.msra.mxu0 0.0
        %375 = vmatprep.mubr.f32.mxu0 0.0
        %376 = vmatmul.mubr.f32.gmra.mrb[0].mxu0 %v305
        %v377 = vpop.f32.mrb[0].mxu0
        %v378 = vadd.f32 0.0, %v377
        %v379 = vpop.f32.mrb[0].mxu0
        %380 = vdwg.mxu0
        %v382 = vsel %vm303, %v273, 0
        %v385 = vsel %vm307, %v295, 0
        %387 = vmatprep.subr.mxu0 0.0
        %388 = vmatpush1.msra.mxu0 %v291
        %389 = vmatprep.subr.mxu0 0.0
        %390 = vmatpush1.msra.mxu0 %v292
        %391 = vmatprep.subr.mxu0 0.0
        %392 = vmatpush1.msra.mxu0 %v293
        %393 = vmatprep.subr.mxu0 0.0
        %394 = vmatpush1.msra.mxu0 %v294
        %395 = vmatprep.subr.mxu0 0.0
        %396 = vmatpush1.msra.mxu0 %v385
        %397 = vmatprep.subr.mxu0 0.0
        %398 = vmatpush1.msra.mxu0 0.0
        %399 = vmatprep.subr.mxu0 0.0
        %400 = vmatpush1.msra.mxu0 0.0
        %401 = vmatprep.subr.mxu0 0.0
        %402 = vmatpush1.msra.mxu0 0.0
        %403 = vmatprep.subr.mxu0 0.0
        %404 = vmatpush1.msra.mxu0 0.0
        %405 = vmatprep.subr.mxu0 0.0
        %406 = vmatpush1.msra.mxu0 0.0
        %407 = vmatprep.subr.mxu0 0.0
        %408 = vmatpush1.msra.mxu0 0.0
        %409 = vmatprep.subr.mxu0 0.0
        %410 = vmatpush1.msra.mxu0 0.0
        %411 = vmatprep.subr.mxu0 0.0
        %412 = vmatpush1.msra.mxu0 0.0
        %413 = vmatprep.subr.mxu0 0.0
        %414 = vmatpush1.msra.mxu0 0.0
        %415 = vmatprep.subr.mxu0 0.0
        %416 = vmatpush1.msra.mxu0 0.0
        %417 = vmatprep.subr.mxu0 0.0
        %418 = vmatpush1.msra.mxu0 0.0
        %419 = vmatprep.subr.mxu0 0.0
        %420 = vmatpush1.msra.mxu0 0.0
        %421 = vmatprep.subr.mxu0 0.0
        %422 = vmatpush1.msra.mxu0 0.0
        %423 = vmatprep.subr.mxu0 0.0
        %424 = vmatpush1.msra.mxu0 0.0
        %425 = vmatprep.subr.mxu0 0.0
        %426 = vmatpush1.msra.mxu0 0.0
        %427 = vmatprep.subr.mxu0 0.0
        %428 = vmatpush1.msra.mxu0 0.0
        %429 = vmatprep.subr.mxu0 0.0
        %430 = vmatpush1.msra.mxu0 0.0
        %431 = vmatprep.subr.mxu0 0.0
        %432 = vmatpush1.msra.mxu0 0.0
        %433 = vmatprep.subr.mxu0 0.0
        %434 = vmatpush1.msra.mxu0 0.0
        %435 = vmatprep.subr.mxu0 0.0
        %436 = vmatpush1.msra.mxu0 0.0
        %437 = vmatprep.subr.mxu0 0.0
        %438 = vmatpush1.msra.mxu0 0.0
        %439 = vmatprep.subr.mxu0 0.0
        %440 = vmatpush1.msra.mxu0 0.0
        %441 = vmatprep.subr.mxu0 0.0
        %442 = vmatpush1.msra.mxu0 0.0
        %443 = vmatprep.subr.mxu0 0.0
        %444 = vmatpush1.msra.mxu0 0.0
        %445 = vmatprep.subr.mxu0 0.0
        %446 = vmatpush1.msra.mxu0 0.0
        %447 = vmatprep.subr.mxu0 0.0
        %448 = vmatpush1.msra.mxu0 0.0
        %449 = vmatprep.subr.mxu0 0.0
        %450 = vmatpush1.msra.mxu0 0.0
        %451 = vmatprep.mubr.f32.mxu0 0.0
        %452 = vmatmul.mubr.f32.gmra.mrb[0].mxu0 %v382
        %v453 = vpop.f32.mrb[0].mxu0
        %v454 = vadd.f32 %v378, %v453
        %v455 = vpop.f32.mrb[0].mxu0
        %456 = vdwg.mxu0
        %v457 = vadd.f32 %v296, %v278
        %s458 = scalar_lea.vmem %s2, 80
        %v459 = vld [vmem:[%s458] sm:$0xff]
        %v460 = vld [vmem:[%s458 + $0x8] sm:$0xff]
        %v461 = vld [vmem:[%s458 + $0x10] sm:$0xff]
        %v462 = vld [vmem:[%s458 + $0x18] sm:$0xff]
        %v463 = vld [vmem:[%s458 + $0x20] sm:$0x1]
        %v465 = vsel %vm303, %v283, 0
        %v468 = vsel %vm307, %v463, 0
        %470 = vmatprep.subr.mxu0 0.0
        %471 = vmatpush1.msra.mxu0 %v459
        %472 = vmatprep.subr.mxu0 0.0
        %473 = vmatpush1.msra.mxu0 %v460
        %474 = vmatprep.subr.mxu0 0.0
        %475 = vmatpush1.msra.mxu0 %v461
        %476 = vmatprep.subr.mxu0 0.0
        %477 = vmatpush1.msra.mxu0 %v462
        %478 = vmatprep.subr.mxu0 0.0
        %479 = vmatpush1.msra.mxu0 %v468
        %480 = vmatprep.subr.mxu0 0.0
        %481 = vmatpush1.msra.mxu0 0.0
        %482 = vmatprep.subr.mxu0 0.0
        %483 = vmatpush1.msra.mxu0 0.0
        %484 = vmatprep.subr.mxu0 0.0
        %485 = vmatpush1.msra.mxu0 0.0
        %486 = vmatprep.subr.mxu0 0.0
        %487 = vmatpush1.msra.mxu0 0.0
        %488 = vmatprep.subr.mxu0 0.0
        %489 = vmatpush1.msra.mxu0 0.0
        %490 = vmatprep.subr.mxu0 0.0
        %491 = vmatpush1.msra.mxu0 0.0
        %492 = vmatprep.subr.mxu0 0.0
        %493 = vmatpush1.msra.mxu0 0.0
        %494 = vmatprep.subr.mxu0 0.0
        %495 = vmatpush1.msra.mxu0 0.0
        %496 = vmatprep.subr.mxu0 0.0
        %497 = vmatpush1.msra.mxu0 0.0
        %498 = vmatprep.subr.mxu0 0.0
        %499 = vmatpush1.msra.mxu0 0.0
        %500 = vmatprep.subr.mxu0 0.0
        %501 = vmatpush1.msra.mxu0 0.0
        %502 = vmatprep.subr.mxu0 0.0
        %503 = vmatpush1.msra.mxu0 0.0
        %504 = vmatprep.subr.mxu0 0.0
        %505 = vmatpush1.msra.mxu0 0.0
        %506 = vmatprep.subr.mxu0 0.0
        %507 = vmatpush1.msra.mxu0 0.0
        %508 = vmatprep.subr.mxu0 0.0
        %509 = vmatpush1.msra.mxu0 0.0
        %510 = vmatprep.subr.mxu0 0.0
        %511 = vmatpush1.msra.mxu0 0.0
        %512 = vmatprep.subr.mxu0 0.0
        %513 = vmatpush1.msra.mxu0 0.0
        %514 = vmatprep.subr.mxu0 0.0
        %515 = vmatpush1.msra.mxu0 0.0
        %516 = vmatprep.subr.mxu0 0.0
        %517 = vmatpush1.msra.mxu0 0.0
        %518 = vmatprep.subr.mxu0 0.0
        %519 = vmatpush1.msra.mxu0 0.0
        %520 = vmatprep.subr.mxu0 0.0
        %521 = vmatpush1.msra.mxu0 0.0
        %522 = vmatprep.subr.mxu0 0.0
        %523 = vmatpush1.msra.mxu0 0.0
        %524 = vmatprep.subr.mxu0 0.0
        %525 = vmatpush1.msra.mxu0 0.0
        %526 = vmatprep.subr.mxu0 0.0
        %527 = vmatpush1.msra.mxu0 0.0
        %528 = vmatprep.subr.mxu0 0.0
        %529 = vmatpush1.msra.mxu0 0.0
        %530 = vmatprep.subr.mxu0 0.0
        %531 = vmatpush1.msra.mxu0 0.0
        %532 = vmatprep.subr.mxu0 0.0
        %533 = vmatpush1.msra.mxu0 0.0
        %534 = vmatprep.mubr.f32.mxu0 0.0
        %535 = vmatmul.mubr.f32.gmra.mrb[0].mxu0 %v465
        %v536 = vpop.f32.mrb[0].mxu0
        %v537 = vadd.f32 0.0, %v536
        %v538 = vpop.f32.mrb[0].mxu0
        %539 = vdwg.mxu0
        %v540 = vadd.f32 %v454, %v537
        %v541 = vadd.f32 %v457, %v283
        %s542 = scalar_lea.vmem %s2, 120
        %v543 = vld [vmem:[%s542] sm:$0xff]
        %v544 = vld [vmem:[%s542 + $0x8] sm:$0xff]
        %v545 = vld [vmem:[%s542 + $0x10] sm:$0xff]
        %v546 = vld [vmem:[%s542 + $0x18] sm:$0xff]
        %v547 = vld [vmem:[%s542 + $0x20] sm:$0x1]
        %v549 = vsel %vm303, %v288, 0
        %v552 = vsel %vm307, %v547, 0
        %554 = vmatprep.subr.mxu0 0.0
        %555 = vmatpush1.msra.mxu0 %v543
        %556 = vmatprep.subr.mxu0 0.0
        %557 = vmatpush1.msra.mxu0 %v544
        %558 = vmatprep.subr.mxu0 0.0
        %559 = vmatpush1.msra.mxu0 %v545
        %560 = vmatprep.subr.mxu0 0.0
        %561 = vmatpush1.msra.mxu0 %v546
        %562 = vmatprep.subr.mxu0 0.0
        %563 = vmatpush1.msra.mxu0 %v552
        %564 = vmatprep.subr.mxu0 0.0
        %565 = vmatpush1.msra.mxu0 0.0
        %566 = vmatprep.subr.mxu0 0.0
        %567 = vmatpush1.msra.mxu0 0.0
        %568 = vmatprep.subr.mxu0 0.0
        %569 = vmatpush1.msra.mxu0 0.0
        %570 = vmatprep.subr.mxu0 0.0
        %571 = vmatpush1.msra.mxu0 0.0
        %572 = vmatprep.subr.mxu0 0.0
        %573 = vmatpush1.msra.mxu0 0.0
        %574 = vmatprep.subr.mxu0 0.0
        %575 = vmatpush1.msra.mxu0 0.0
        %576 = vmatprep.subr.mxu0 0.0
        %577 = vmatpush1.msra.mxu0 0.0
        %578 = vmatprep.subr.mxu0 0.0
        %579 = vmatpush1.msra.mxu0 0.0
        %580 = vmatprep.subr.mxu0 0.0
        %581 = vmatpush1.msra.mxu0 0.0
        %582 = vmatprep.subr.mxu0 0.0
        %583 = vmatpush1.msra.mxu0 0.0
        %584 = vmatprep.subr.mxu0 0.0
        %585 = vmatpush1.msra.mxu0 0.0
        %586 = vmatprep.subr.mxu0 0.0
        %587 = vmatpush1.msra.mxu0 0.0
        %588 = vmatprep.subr.mxu0 0.0
        %589 = vmatpush1.msra.mxu0 0.0
        %590 = vmatprep.subr.mxu0 0.0
        %591 = vmatpush1.msra.mxu0 0.0
        %592 = vmatprep.subr.mxu0 0.0
        %593 = vmatpush1.msra.mxu0 0.0
        %594 = vmatprep.subr.mxu0 0.0
        %595 = vmatpush1.msra.mxu0 0.0
        %596 = vmatprep.subr.mxu0 0.0
        %597 = vmatpush1.msra.mxu0 0.0
        %598 = vmatprep.subr.mxu0 0.0
        %599 = vmatpush1.msra.mxu0 0.0
        %600 = vmatprep.subr.mxu0 0.0
        %601 = vmatpush1.msra.mxu0 0.0
        %602 = vmatprep.subr.mxu0 0.0
        %603 = vmatpush1.msra.mxu0 0.0
        %604 = vmatprep.subr.mxu0 0.0
        %605 = vmatpush1.msra.mxu0 0.0
        %606 = vmatprep.subr.mxu0 0.0
        %607 = vmatpush1.msra.mxu0 0.0
        %608 = vmatprep.subr.mxu0 0.0
        %609 = vmatpush1.msra.mxu0 0.0
        %610 = vmatprep.subr.mxu0 0.0
        %611 = vmatpush1.msra.mxu0 0.0
        %612 = vmatprep.subr.mxu0 0.0
        %613 = vmatpush1.msra.mxu0 0.0
        %614 = vmatprep.subr.mxu0 0.0
        %615 = vmatpush1.msra.mxu0 0.0
        %616 = vmatprep.subr.mxu0 0.0
        %617 = vmatpush1.msra.mxu0 0.0
        %618 = vmatprep.mubr.f32.mxu0 0.0
        %619 = vmatmul.mubr.f32.gmra.mrb[0].mxu0 %v549
        %v620 = vpop.f32.mrb[0].mxu0
        %v621 = vadd.f32 0.0, %v620
        %v622 = vpop.f32.mrb[0].mxu0
        %623 = vdwg.mxu0
        %v624 = vadd.f32 %v540, %v621
        %v625 = vadd.f32 %v541, %v288
        %v626 = vadd.f32 %v625, 1e-10
        %628 = vset.pattern.permute.xlu0 32
        %629 = vperm.xlu0 %628, %v626
        %v630 = vpop.permute.xlu0 %629
        %v632 = vrcp.pop %v630
        %v633 = vmul.f32 %v624, %v632
        %v634 = vmax.f32 %v633, 0.0
        %635 = vst.msk [vmem:[%s176] sm:$0xff] %vm191, %v634
        %s636 = sand.u32 %s98, 1
        %s637 = scalar_lea.sflag [#allocation3], %s636
        %s638 = sand.u32 %s98, 1
        %s639 = smul.addr %s638, 8
        %s640 = scalar_lea.vmem [#allocation2], %s639
        // Predicated region
        $region33: #{gcn_forward.1} parent=31 // pred_check
          %p641 = pneg %p108
        $region34: #{gcn_forward.1} parent=31 // pred_check_branch
          %643 = sbr.rel (%p641) target = $region36
        $region35: #{gcn_forward.1} parent=31 // pred_region
          %s645 = ssub.s32 128, 128
          %646 = vsyncadd %s637, %s645
          %s647 = smul.addr %s17, 128
          %s648 = scalar_lea.hbm %s3, %s647
          %s650 = sshll.u32 %s640, 4
          %s651 = int_to_ptr.vmem [resolvable:$true] %s650
          %653 = dma.vmem_to_hbm [thread:$0]  %s651, 128, %s648, %s637
        $region36: #{gcn_forward.1} parent=31 // pred_fallthru
          _
      $region32: #{gcn_forward.1} parent=5 // pred_fallthru
        _
      %p654 = scmp.le.s32.totalorder 2, %s12
      // Predicated region
      $region37: #{gcn_forward.1} parent=5 // pred_check
        %p655 = pneg %p654
      $region38: #{gcn_forward.1} parent=5 // pred_check_branch
        %657 = sbr.rel (%p655) target = $region40
      $region39: #{gcn_forward.1} parent=5 // pred_region
        %s658 = ssub.s32 %s12, 2
        // Predicated region
        $region41: #{gcn_forward.1} parent=39 // pred_check
          %p659 = pneg %p114
        $region42: #{gcn_forward.1} parent=39 // pred_check_branch
          %661 = sbr.rel (%p659) target = $region44
        $region43: #{gcn_forward.1} parent=39 // pred_region
          %s662 = sand.u32 %s99, 1
          %s663 = scalar_lea.sflag [#allocation3], %s662
          %s664 = sand.u32 %s99, 1
          %s665 = smul.addr %s664, 8
          %s666 = scalar_lea.vmem [#allocation2], %s665
          %667 = dma.done %s663, 128
        $region44: #{gcn_forward.1} parent=39 // pred_fallthru
          _
      $region40: #{gcn_forward.1} parent=5 // pred_fallthru
        _
    $region6: #{gcn_forward.1} parent=1 // loop_footer
      %s16 = sadd.s32 1, %s12
    $region7: #{gcn_forward.1} parent=1 // loop_footer_branch
      %11 = sbr.rel target = $region3
    $region8: #{gcn_forward.1} parent=1 // loop_exit
      _
    %668 = vsyncpa [#allocation3], 1
    %s669 = scalar_lea.sflag [#allocation3], 1
    %670 = vsyncpa %s669, 1

</llo_original>
